<compile_context>
chip_gen: v7x
topology: tpu7x:2x2x1
jax: 0.10.0
libtpu: 0.0.40
codegen_flags: <defaults>
</compile_context>

<pallas_src>
import functools

import numpy as np
import jax
import jax.numpy as jnp
from jax.experimental import pallas as pl
from jax.experimental.pallas import tpu as pltpu

try:  # prefer scipy if present; fall back to a pure-python Hungarian otherwise
    from scipy.optimize import linear_sum_assignment as _scipy_lsa
except Exception:  # pragma: no cover
    _scipy_lsa = None


def _ceil_div(a, b):
    return (a + b - 1) // b


def _round_up(a, b):
    return _ceil_div(a, b) * b


def _choose_pixel_tile(n, target_tn=2048):
    """Pick a pixel-tile width TN (multiple of 128, <= ~target_tn) minimizing padding."""
    if n <= 128:
        return n, n                       # single full-extent tile, no padding
    kt = _ceil_div(n, target_tn)
    tn = _round_up(_ceil_div(n, kt), 128)
    return tn, kt * tn


# ---------------------------------------------------------------------------
# Pallas kernel: per-batch transposed cost matrix
#   C^T[m, q] = w_m * (bce[q, m] + dice[q, m]) + w_p * (1 - probs[label[m], q])
# ---------------------------------------------------------------------------
def _cost_kernel(pm_ref, gm_ref, pg_ref, c_ref,
                 acc_ref, negsum_ref, ssum_ref, gsum_ref,
                 *, n_pix, needs_mask, w_masks, w_probs):
    k = pl.program_id(1)
    q = pm_ref.shape[1]
    tn = pm_ref.shape[2]

    @pl.when(k == 0)
    def _init():
        acc_ref[...] = jnp.zeros_like(acc_ref)
        negsum_ref[...] = jnp.zeros_like(negsum_ref)
        ssum_ref[...] = jnp.zeros_like(ssum_ref)
        gsum_ref[...] = jnp.zeros_like(gsum_ref)

    pm = pm_ref[0].astype(jnp.float32)            # (Q, TN) predicted probabilities
    gm = gm_ref[0].astype(jnp.float32)            # (M, TN) binary gt masks (padded rows/cols = 0)

    eps = 1e-6
    pm = jnp.clip(pm, eps, 1.0 - eps)             # keep -log finite for pm == 0 or 1
    pos = -jnp.log(pm)                            # BCE vs target = 1
    neg = -jnp.log(1.0 - pm)                      # BCE vs target = 0
    sig = jax.nn.sigmoid(pm)                      # reference re-applies sigmoid for dice
    pmn = pos - neg                               # pos@gm + neg@(1-gm) == pmn@gm + rowsum(neg)

    if needs_mask:                                # static: only when N was padded to N_pad
        col = jax.lax.broadcasted_iota(jnp.int32, (q, tn), 1) + k * tn
        valid = (col < n_pix).astype(jnp.float32)
        pmn = pmn * valid
        neg = neg * valid
        sig = sig * valid
        # gm padding is already zero, so its dot / sum contributions vanish

    # Single stacked MXU call per tile: (M, TN) x (TN, 2Q) -> (M, 2Q)
    #   cols [0:Q)  = gm · (pos - neg)^T   (BCE partial, transposed)
    #   cols [Q:2Q) = gm · sigmoid(pm)^T   (dice numerator / 2, transposed)
    stacked = jnp.concatenate([pmn, sig], axis=0)                 # (2Q, TN)
    acc_ref[...] += jax.lax.dot_general(
        gm, stacked, (((1,), (1,)), ((), ())),
        preferred_element_type=jnp.float32)

    # Row/col sums on the XLU slot (free relative to the MXU/VPU work).
    negsum_ref[...] += jnp.sum(neg, axis=-1)[None, :]             # (1, Q)
    ssum_ref[...] += jnp.sum(sig, axis=-1)[None, :]               # (1, Q)
    gsum_ref[...] += jnp.sum(gm, axis=-1, keepdims=True)          # (M, 1)

    @pl.when(k == pl.num_programs(1) - 1)
    def _finalize():
        acc = acc_ref[...]                                        # (M, 2Q)
        bce_t = (acc[:, :q] + negsum_ref[...]) / float(n_pix)     # (M, Q)
        dice_t = 1.0 - (2.0 * acc[:, q:] + 1.0) / (
            ssum_ref[...] + gsum_ref[...] + 1.0)                  # (M, Q)
        pg = pg_ref[0].astype(jnp.float32)                        # (M, Q) gathered class probs
        c_ref[0] = (w_masks * (bce_t + dice_t)
                    + w_probs * (1.0 - pg)).astype(c_ref.dtype)


def compute_cost_matrices(pred_masks, gt_mask, prob_gather,
                          *, cost_masks=1.0, cost_probs=1.0, target_tn=2048):
    """pred_masks (bs,Q,N), gt_mask (bs,Mmax,N), prob_gather (bs,Mmax,Q) -> C^T (bs,Mmax,Q)."""
    bs, Q, N = pred_masks.shape
    Mmax = gt_mask.shape[1]

    tn, n_pad = _choose_pixel_tile(N, target_tn=target_tn)
    kt = n_pad // tn
    if n_pad != N:
        # pad the pixel axis; padded pm columns are masked in-kernel, padded gm columns are 0
        pred_masks = jnp.pad(pred_masks, ((0, 0), (0, 0), (0, n_pad - N)),
                             constant_values=0.5)
        gt_mask = jnp.pad(gt_mask, ((0, 0), (0, 0), (0, n_pad - N)))

    kernel = functools.partial(
        _cost_kernel, n_pix=N, needs_mask=(n_pad != N),
        w_masks=float(cost_masks), w_probs=float(cost_probs))

    return pl.pallas_call(
        kernel,
        out_shape=jax.ShapeDtypeStruct((bs, Mmax, Q), jnp.float32),
        grid_spec=pltpu.PrefetchScalarGridSpec(
            num_scalar_prefetch=0,
            grid=(bs, kt),
            in_specs=[
                pl.BlockSpec((1, Q, tn),    lambda b, k: (b, 0, k)),   # pred_masks tile
                pl.BlockSpec((1, Mmax, tn), lambda b, k: (b, 0, k)),   # gt_mask tile
                pl.BlockSpec((1, Mmax, Q),  lambda b, k: (b, 0, 0)),   # gathered probs (resident)
            ],
            out_specs=pl.BlockSpec((1, Mmax, Q), lambda b, k: (b, 0, 0)),
            scratch_shapes=[
                pltpu.VMEM((Mmax, 2 * Q), jnp.float32),   # stacked dot accumulator
                pltpu.VMEM((1, Q), jnp.float32),          # rowsum(neg) per query
                pltpu.VMEM((1, Q), jnp.float32),          # rowsum(sigmoid(pm)) per query
                pltpu.VMEM((Mmax, 1), jnp.float32),       # rowsum(gm) per instance
            ],
        ),
        compiler_params=pltpu.CompilerParams(
            dimension_semantics=("parallel", "arbitrary"),
            # 48 MiB fits every generation (v7x has only 64 MiB physical VMEM);
            # on v6e/v5e a larger limit + bigger target_tn can be used.
            vmem_limit_bytes=48 * 1024 * 1024,
        ),
    )(pred_masks, gt_mask, prob_gather)


# ---------------------------------------------------------------------------
# Host-side Hungarian algorithm (== scipy.optimize.linear_sum_assignment)
# ---------------------------------------------------------------------------
# TODO(synk): linear_sum_assignment is a sequential, data-dependent algorithm with no clean
# Pallas equivalent; it runs on the host over the tiny (Q x num_inst) cost matrix.
def _linear_sum_assignment(cost):
    cost = np.asarray(cost, dtype=np.float64)
    if _scipy_lsa is not None:
        r, c = _scipy_lsa(cost)
        return np.asarray(r, dtype=np.int64), np.asarray(c, dtype=np.int64)
    transposed = False
    if cost.shape[0] > cost.shape[1]:
        cost = cost.T
        transposed = True
    n, m = cost.shape  # n <= m
    INF = 1e18
    u = np.zeros(n + 1)
    v = np.zeros(m + 1)
    p = np.zeros(m + 1, dtype=np.int64)
    way = np.zeros(m + 1, dtype=np.int64)
    for i in range(1, n + 1):
        p[0] = i
        j0 = 0
        minv = np.full(m + 1, INF)
        used = np.zeros(m + 1, dtype=bool)
        while True:
            used[j0] = True
            i0 = p[j0]
            delta = INF
            j1 = 0
            for j in range(1, m + 1):
                if not used[j]:
                    cur = cost[i0 - 1, j - 1] - u[i0] - v[j]
                    if cur < minv[j]:
                        minv[j] = cur
                        way[j] = j0
                    if minv[j] < delta:
                        delta = minv[j]
                        j1 = j
            for j in range(m + 1):
                if used[j]:
                    u[p[j]] += delta
                    v[j] -= delta
                else:
                    minv[j] -= delta
            j0 = j1
            if p[j0] == 0:
                break
        while True:
            j1 = way[j0]
            p[j0] = p[j1]
            j0 = j1
            if j0 == 0:
                break
    rows, cols = [], []
    for j in range(1, m + 1):
        if p[j] != 0:
            rows.append(p[j] - 1)
            cols.append(j - 1)
    rows = np.asarray(rows, dtype=np.int64)
    cols = np.asarray(cols, dtype=np.int64)
    if transposed:
        rows, cols = cols, rows
    order = np.argsort(rows)
    return rows[order], cols[order]


# ---------------------------------------------------------------------------
# HungarianMatcher forward
# ---------------------------------------------------------------------------
class HungarianMatcherPallas:
    def __init__(self, cost_masks: float = 1.0, cost_probs: float = 1.0):
        assert cost_masks != 0 or cost_probs != 0, "all costs cant be 0"
        self.cost_masks = cost_masks
        self.cost_probs = cost_probs

    def __call__(self, gt_mask, labels, pred_masks, probs):
        bs = probs.shape[0]

        # probs gathered at gt labels: pg[b, m, q] = probs[b, labels[b, m], q]  (bs, Mmax, Q)
        # invalid labels are clamped to 0; their columns are dropped host-side below.
        safe_labels = jnp.where(labels >= 0, labels, 0).astype(jnp.int32)
        pg = jnp.take_along_axis(probs, safe_labels[:, :, None], axis=1)

        # hot path on TPU: transposed cost matrices (bs, Mmax, Q)
        C_t = compute_cost_matrices(pred_masks, gt_mask, pg,
                                    cost_masks=self.cost_masks,
                                    cost_probs=self.cost_probs)
        C_t = np.asarray(jax.block_until_ready(C_t))
        labels_np = np.asarray(labels)

        indices = []
        for b in range(bs):
            valid = np.nonzero(labels_np[b] != -1)[0]
            c_qm = C_t[b][valid, :].T          # (Q, num_inst)
            rows, cols = _linear_sum_assignment(c_qm)
            indices.append((jnp.asarray(rows, dtype=jnp.int64),
                            jnp.asarray(cols, dtype=jnp.int64)))
        return indices


if __name__ == "__main__":
    key = jax.random.PRNGKey(0)
    k1, k2, k3 = jax.random.split(key, 3)

    bs, Q, num_classes, H, W, Mmax = 2, 8, 5, 16, 16, 4
    N = H * W

    # keep the big mask tensors in bf16 in HBM (kernel upcasts internally)
    gt_mask = (jax.random.uniform(k1, (bs, Mmax, H, W)) > 0.5)
    gt_mask = gt_mask.reshape(bs, Mmax, N).astype(jnp.bfloat16)              # (bs, Mmax, N)
    pred_masks = jax.nn.sigmoid(jax.random.normal(k2, (bs, Q, H, W)))
    pred_masks = pred_masks.reshape(bs, Q, N).astype(jnp.bfloat16)           # (bs, Q, N)
    probs = jax.nn.softmax(jax.random.normal(k3, (bs, num_classes, Q)), axis=1)  # (bs, C, Q)
    labels = jnp.array([[0, 2, -1, 1],
                        [3, -1, -1, 4]], dtype=jnp.int32)                    # (bs, Mmax)

    matcher = HungarianMatcherPallas(cost_masks=1.0, cost_probs=1.0)
    indices = matcher(gt_mask, labels, pred_masks, probs)
    for r, c in indices:
        jax.block_until_ready(r)
        jax.block_until_ready(c)
    print("KERNEL_OK")
</pallas_src>

<mosaic_0001>
module attributes {stable_mosaic.version = 11 : i64} {
  func.func @_cost_kernel(%arg0: i32, %arg1: i32, %arg2: memref<1x8x256xbf16, #tpu.memory_space<vmem>>, %arg3: memref<1x4x256xbf16, #tpu.memory_space<vmem>>, %arg4: memref<1x4x8xf32, #tpu.memory_space<vmem>>, %arg5: memref<1x4x8xf32, #tpu.memory_space<vmem>>, %arg6: memref<4x16xf32, #tpu.memory_space<vmem>>, %arg7: memref<1x8xf32, #tpu.memory_space<vmem>>, %arg8: memref<1x8xf32, #tpu.memory_space<vmem>>, %arg9: memref<4x1xf32, #tpu.memory_space<vmem>>) attributes {dimension_semantics = [#tpu.dimension_semantics<parallel>, #tpu.dimension_semantics<arbitrary>], iteration_bounds = array<i64: 2, 1>, scalar_prefetch = 0 : i64, scratch_operands = 4 : i64, tpu.core_type = #tpu.core_type<tc>, window_params = [{transform_indices = @transform_0, window_bounds = array<i64: 1, 8, 256>}, {transform_indices = @transform_1, window_bounds = array<i64: 1, 4, 256>}, {transform_indices = @transform_2, window_bounds = array<i64: 1, 4, 8>}, {transform_indices = @transform_3, window_bounds = array<i64: 1, 4, 8>}]} {
    %c0_i32 = arith.constant 0 : i32
    %0 = arith.cmpi eq, %arg1, %c0_i32 : i32
    %1 = arith.extui %0 : i1 to i32
    %c0_i32_0 = arith.constant 0 : i32
    %2 = arith.cmpi ne, %1, %c0_i32_0 : i32
    scf.if %2 {
      %cst_33 = arith.constant 0.000000e+00 : f32
      %50 = vector.broadcast %cst_33 : f32 to vector<4x16xf32>
      %c0_34 = arith.constant 0 : index
      %c0_35 = arith.constant 0 : index
      %51 = vector.load %arg6[%c0_34, %c0_35] : memref<4x16xf32, #tpu.memory_space<vmem>>, vector<4x16xf32>
      tpu.vector_store %arg6[%c0_34, %c0_35], %50 {strides = array<i32>} : memref<4x16xf32, #tpu.memory_space<vmem>>, vector<4x16xf32>,
      %cst_36 = arith.constant 0.000000e+00 : f32
      %52 = vector.broadcast %cst_36 : f32 to vector<1x8xf32>
      %c0_37 = arith.constant 0 : index
      %c0_38 = arith.constant 0 : index
      %53 = vector.load %arg7[%c0_37, %c0_38] : memref<1x8xf32, #tpu.memory_space<vmem>>, vector<1x8xf32>
      tpu.vector_store %arg7[%c0_37, %c0_38], %52 {strides = array<i32>} : memref<1x8xf32, #tpu.memory_space<vmem>>, vector<1x8xf32>,
      %cst_39 = arith.constant 0.000000e+00 : f32
      %54 = vector.broadcast %cst_39 : f32 to vector<1x8xf32>
      %c0_40 = arith.constant 0 : index
      %c0_41 = arith.constant 0 : index
      %55 = vector.load %arg8[%c0_40, %c0_41] : memref<1x8xf32, #tpu.memory_space<vmem>>, vector<1x8xf32>
      tpu.vector_store %arg8[%c0_40, %c0_41], %54 {strides = array<i32>} : memref<1x8xf32, #tpu.memory_space<vmem>>, vector<1x8xf32>,
      %cst_42 = arith.constant 0.000000e+00 : f32
      %56 = vector.broadcast %cst_42 : f32 to vector<4x1xf32>
      %c0_43 = arith.constant 0 : index
      %c0_44 = arith.constant 0 : index
      %57 = vector.load %arg9[%c0_43, %c0_44] : memref<4x1xf32, #tpu.memory_space<vmem>>, vector<4x1xf32>
      tpu.vector_store %arg9[%c0_43, %c0_44], %56 {strides = array<i32>} : memref<4x1xf32, #tpu.memory_space<vmem>>, vector<4x1xf32>,
    } else {
    }
    %c0 = arith.constant 0 : index
    %c0_1 = arith.constant 0 : index
    %c0_2 = arith.constant 0 : index
    %3 = vector.load %arg2[%c0, %c0_1, %c0_2] : memref<1x8x256xbf16, #tpu.memory_space<vmem>>, vector<1x8x256xbf16>
    %4 = vector.shape_cast %3 : vector<1x8x256xbf16> to vector<8x256xbf16>
    %5 = arith.extf %4 : vector<8x256xbf16> to vector<8x256xf32>
    %c0_3 = arith.constant 0 : index
    %c0_4 = arith.constant 0 : index
    %c0_5 = arith.constant 0 : index
    %6 = vector.load %arg3[%c0_3, %c0_4, %c0_5] : memref<1x4x256xbf16, #tpu.memory_space<vmem>>, vector<1x4x256xbf16>
    %7 = vector.shape_cast %6 : vector<1x4x256xbf16> to vector<4x256xbf16>
    %8 = arith.extf %7 : vector<4x256xbf16> to vector<4x256xf32>
    %cst = arith.constant 9.99999997E-7 : f32
    %cst_6 = arith.constant 0.999998986 : f32
    %9 = vector.broadcast %cst : f32 to vector<8x256xf32>
    %10 = arith.maximumf %9, %5 : vector<8x256xf32>
    %11 = vector.broadcast %cst_6 : f32 to vector<8x256xf32>
    %12 = arith.minimumf %11, %10 : vector<8x256xf32>
    %13 = math.log %12 : vector<8x256xf32>
    %cst_7 = arith.constant 0.000000e+00 : f32
    %14 = vector.broadcast %cst_7 : f32 to vector<8x256xf32>
    %15 = arith.subf %14, %13 : vector<8x256xf32>
    %cst_8 = arith.constant 1.000000e+00 : f32
    %16 = vector.broadcast %cst_8 : f32 to vector<8x256xf32>
    %17 = arith.subf %16, %12 : vector<8x256xf32>
    %18 = math.log %17 : vector<8x256xf32>
    %cst_9 = arith.constant 0.000000e+00 : f32
    %19 = vector.broadcast %cst_9 : f32 to vector<8x256xf32>
    %20 = arith.subf %19, %18 : vector<8x256xf32>
    %21 = arith.negf %12 : vector<8x256xf32>
    %22 = math.exp %21 : vector<8x256xf32>
    %cst_10 = arith.constant 1.000000e+00 : f32
    %23 = vector.broadcast %cst_10 : f32 to vector<8x256xf32>
    %24 = arith.addf %23, %22 : vector<8x256xf32>
    %25 = arith.divf %23, %24 : vector<8x256xf32>
    %26 = arith.subf %15, %20 : vector<8x256xf32>
    %27 = tpu.concatenate %26, %25 in 0 : vector<8x256xf32>, vector<8x256xf32> -> vector<16x256xf32>
    %c0_11 = arith.constant 0 : index
    %c0_12 = arith.constant 0 : index
    %28 = vector.load %arg6[%c0_11, %c0_12] : memref<4x16xf32, #tpu.memory_space<vmem>>, vector<4x16xf32>
    %cst_13 = arith.constant dense<0.000000e+00> : vector<4x16xf32>
    %29 = tpu.matmul %8, %27, %cst_13 {dimension_numbers = #tpu.dot_dimension_numbers<[1], [1], [0], [0], [0, 0, 1, 0], [], []>} : vector<4x256xf32>, vector<16x256xf32>, vector<4x16xf32> -> vector<4x16xf32>
    %30 = arith.addf %28, %29 : vector<4x16xf32>
    %c0_14 = arith.constant 0 : index
    %c0_15 = arith.constant 0 : index
    %31 = vector.load %arg6[%c0_14, %c0_15] : memref<4x16xf32, #tpu.memory_space<vmem>>, vector<4x16xf32>
    tpu.vector_store %arg6[%c0_14, %c0_15], %30 {strides = array<i32>} : memref<4x16xf32, #tpu.memory_space<vmem>>, vector<4x16xf32>,
    %c0_16 = arith.constant 0 : index
    %c0_17 = arith.constant 0 : index
    %32 = vector.load %arg7[%c0_16, %c0_17] : memref<1x8xf32, #tpu.memory_space<vmem>>, vector<1x8xf32>
    %cst_18 = arith.constant dense<0.000000e+00> : vector<8xf32>
    %33 = vector.multi_reduction <add>, %20, %cst_18 [1] : vector<8x256xf32> to vector<8xf32>
    %34 = vector.shape_cast %33 : vector<8xf32> to vector<1x8xf32>
    %35 = arith.addf %32, %34 : vector<1x8xf32>
    %c0_19 = arith.constant 0 : index
    %c0_20 = arith.constant 0 : index
    %36 = vector.load %arg7[%c0_19, %c0_20] : memref<1x8xf32, #tpu.memory_space<vmem>>, vector<1x8xf32>
    tpu.vector_store %arg7[%c0_19, %c0_20], %35 {strides = array<i32>} : memref<1x8xf32, #tpu.memory_space<vmem>>, vector<1x8xf32>,
    %c0_21 = arith.constant 0 : index
    %c0_22 = arith.constant 0 : index
    %37 = vector.load %arg8[%c0_21, %c0_22] : memref<1x8xf32, #tpu.memory_space<vmem>>, vector<1x8xf32>
    %cst_23 = arith.constant dense<0.000000e+00> : vector<8xf32>
    %38 = vector.multi_reduction <add>, %25, %cst_23 [1] : vector<8x256xf32> to vector<8xf32>
    %39 = vector.shape_cast %38 : vector<8xf32> to vector<1x8xf32>
    %40 = arith.addf %37, %39 : vector<1x8xf32>
    %c0_24 = arith.constant 0 : index
    %c0_25 = arith.constant 0 : index
    %41 = vector.load %arg8[%c0_24, %c0_25] : memref<1x8xf32, #tpu.memory_space<vmem>>, vector<1x8xf32>
    tpu.vector_store %arg8[%c0_24, %c0_25], %40 {strides = array<i32>} : memref<1x8xf32, #tpu.memory_space<vmem>>, vector<1x8xf32>,
    %c0_26 = arith.constant 0 : index
    %c0_27 = arith.constant 0 : index
    %42 = vector.load %arg9[%c0_26, %c0_27] : memref<4x1xf32, #tpu.memory_space<vmem>>, vector<4x1xf32>
    %cst_28 = arith.constant dense<0.000000e+00> : vector<4xf32>
    %43 = vector.multi_reduction <add>, %8, %cst_28 [1] : vector<4x256xf32> to vector<4xf32>
    %44 = vector.shape_cast %43 : vector<4xf32> to vector<4x1xf32>
    %45 = arith.addf %42, %44 : vector<4x1xf32>
    %c0_29 = arith.constant 0 : index
    %c0_30 = arith.constant 0 : index
    %46 = vector.load %arg9[%c0_29, %c0_30] : memref<4x1xf32, #tpu.memory_space<vmem>>, vector<4x1xf32>
    tpu.vector_store %arg9[%c0_29, %c0_30], %45 {strides = array<i32>} : memref<4x1xf32, #tpu.memory_space<vmem>>, vector<4x1xf32>,
    %c0_i32_31 = arith.constant 0 : i32
    %47 = arith.cmpi eq, %arg1, %c0_i32_31 : i32
    %48 = arith.extui %47 : i1 to i32
    %c0_i32_32 = arith.constant 0 : i32
    %49 = arith.cmpi ne, %48, %c0_i32_32 : i32
    scf.if %49 {
      %c0_33 = arith.constant 0 : index
      %c0_34 = arith.constant 0 : index
      %50 = vector.load %arg6[%c0_33, %c0_34] : memref<4x16xf32, #tpu.memory_space<vmem>>, vector<4x16xf32>
      %51 = vector.extract_strided_slice %50 {offsets = [0, 0], sizes = [4, 8], strides = [1, 1]} : vector<4x16xf32> to vector<4x8xf32>
      %c0_35 = arith.constant 0 : index
      %c0_36 = arith.constant 0 : index
      %52 = vector.load %arg7[%c0_35, %c0_36] : memref<1x8xf32, #tpu.memory_space<vmem>>, vector<1x8xf32>
      %53 = vector.broadcast %52 : vector<1x8xf32> to vector<4x8xf32>
      %54 = arith.addf %51, %53 : vector<4x8xf32>
      %cst_37 = arith.constant 2.560000e+02 : f32
      %55 = vector.broadcast %cst_37 : f32 to vector<4x8xf32>
      %56 = arith.divf %54, %55 : vector<4x8xf32>
      %57 = vector.extract_strided_slice %50 {offsets = [0, 8], sizes = [4, 8], strides = [1, 1]} : vector<4x16xf32> to vector<4x8xf32>
      %cst_38 = arith.constant 2.000000e+00 : f32
      %58 = vector.broadcast %cst_38 : f32 to vector<4x8xf32>
      %59 = arith.mulf %58, %57 : vector<4x8xf32>
      %cst_39 = arith.constant 1.000000e+00 : f32
      %60 = vector.broadcast %cst_39 : f32 to vector<4x8xf32>
      %61 = arith.addf %59, %60 : vector<4x8xf32>
      %c0_40 = arith.constant 0 : index
      %c0_41 = arith.constant 0 : index
      %62 = vector.load %arg8[%c0_40, %c0_41] : memref<1x8xf32, #tpu.memory_space<vmem>>, vector<1x8xf32>
      %c0_42 = arith.constant 0 : index
      %c0_43 = arith.constant 0 : index
      %63 = vector.load %arg9[%c0_42, %c0_43] : memref<4x1xf32, #tpu.memory_space<vmem>>, vector<4x1xf32>
      %64 = vector.broadcast %62 : vector<1x8xf32> to vector<4x8xf32>
      %65 = vector.broadcast %63 : vector<4x1xf32> to vector<4x8xf32>
      %66 = arith.addf %64, %65 : vector<4x8xf32>
      %cst_44 = arith.constant 1.000000e+00 : f32
      %67 = vector.broadcast %cst_44 : f32 to vector<4x8xf32>
      %68 = arith.addf %66, %67 : vector<4x8xf32>
      %69 = arith.divf %61, %68 : vector<4x8xf32>
      %cst_45 = arith.constant 1.000000e+00 : f32
      %70 = vector.broadcast %cst_45 : f32 to vector<4x8xf32>
      %71 = arith.subf %70, %69 : vector<4x8xf32>
      %c0_46 = arith.constant 0 : index
      %c0_47 = arith.constant 0 : index
      %c0_48 = arith.constant 0 : index
      %72 = vector.load %arg4[%c0_46, %c0_47, %c0_48] : memref<1x4x8xf32, #tpu.memory_space<vmem>>, vector<1x4x8xf32>
      %73 = vector.shape_cast %72 : vector<1x4x8xf32> to vector<4x8xf32>
      %74 = arith.addf %56, %71 : vector<4x8xf32>
      %cst_49 = arith.constant 1.000000e+00 : f32
      %75 = vector.broadcast %cst_49 : f32 to vector<4x8xf32>
      %76 = arith.mulf %75, %74 : vector<4x8xf32>
      %cst_50 = arith.constant 1.000000e+00 : f32
      %77 = vector.broadcast %cst_50 : f32 to vector<4x8xf32>
      %78 = arith.subf %77, %73 : vector<4x8xf32>
      %cst_51 = arith.constant 1.000000e+00 : f32
      %79 = vector.broadcast %cst_51 : f32 to vector<4x8xf32>
      %80 = arith.mulf %79, %78 : vector<4x8xf32>
      %81 = arith.addf %76, %80 : vector<4x8xf32>
      %c0_52 = arith.constant 0 : index
      %c0_53 = arith.constant 0 : index
      %c0_54 = arith.constant 0 : index
      %82 = vector.load %arg5[%c0_52, %c0_53, %c0_54] : memref<1x4x8xf32, #tpu.memory_space<vmem>>, vector<1x4x8xf32>
      %83 = vector.shape_cast %82 : vector<1x4x8xf32> to vector<4x8xf32>
      %84 = vector.shape_cast %81 : vector<4x8xf32> to vector<1x4x8xf32>
      tpu.vector_store %arg5[%c0_52, %c0_53, %c0_54], %84 {strides = array<i32>} : memref<1x4x8xf32, #tpu.memory_space<vmem>>, vector<1x4x8xf32>,
    } else {
    }
    return
  }
  func.func @transform_0(%arg0: i32, %arg1: i32) -> (i32, i32, i32) {
    %c0_i32 = arith.constant 0 : i32
    %c0_i32_0 = arith.constant 0 : i32
    return %arg0, %c0_i32, %arg1 : i32, i32, i32
  }
  func.func @transform_1(%arg0: i32, %arg1: i32) -> (i32, i32, i32) {
    %c0_i32 = arith.constant 0 : i32
    %c0_i32_0 = arith.constant 0 : i32
    return %arg0, %c0_i32, %arg1 : i32, i32, i32
  }
  func.func @transform_2(%arg0: i32, %arg1: i32) -> (i32, i32, i32) {
    %c0_i32 = arith.constant 0 : i32
    %c0_i32_0 = arith.constant 0 : i32
    %c0_i32_1 = arith.constant 0 : i32
    return %arg0, %c0_i32, %c0_i32_0 : i32, i32, i32
  }
  func.func @transform_3(%arg0: i32, %arg1: i32) -> (i32, i32, i32) {
    %c0_i32 = arith.constant 0 : i32
    %c0_i32_0 = arith.constant 0 : i32
    %c0_i32_1 = arith.constant 0 : i32
    return %arg0, %c0_i32, %c0_i32_0 : i32, i32, i32
  }
}

</mosaic_0001>

<llo_original>
// kernel: tpu_custom_call.1
$region0: #{tpu_custom_call.1}
  #allocation0 [shape = 'u32[]', space=smem, size = 0x4, offset = 0x4, fixed_abs, tag = 'smem constant byte address 0x4 - core index']
  #allocation1 [shape = 'u32[144,128]{1,0:T(1,128)}', space=vmem, size = 0x12000, scoped, tag = 'internal scratch']
  #allocation2 [shape = 'f32[4,16]{1,0:T(4,128)}', space=vmem, size = 0x800, scoped, tag = 'scratch operand']
  #allocation3 [shape = 'f32[1,8]{1,0:T(1,128)}', space=vmem, size = 0x200, scoped, tag = 'scratch operand']
  #allocation4 [shape = 'f32[1,8]{1,0:T(1,128)}', space=vmem, size = 0x200, scoped, tag = 'scratch operand']
  #allocation5 [shape = 'f32[4,1]{1,0:T(4,128)}', space=vmem, size = 0x800, scoped, tag = 'scratch operand']
  %s0 = inlined_call_operand.hbm [shape: bf16[2,8,256], index: 0, kind: input, shape index: {}]
  %s1 = inlined_call_operand.hbm [shape: bf16[2,4,256], index: 1, kind: input, shape index: {}]
  %s2 = inlined_call_operand.hbm [shape: f32[2,4,8], index: 2, kind: input, shape index: {}]
  %s3 = inlined_call_operand.hbm [shape: f32[2,4,8], index: 3, kind: output, shape index: {}]
  %s4 = sld [smem:[#allocation0]]
  $region65: #{tpu_custom_call.1} parent=0
    _
  %s6 = ssub.s32 1, %s4
  %s7 = scalar_select 0, %s6, %s4
  $region1: #{tpu_custom_call.1} parent=0
    #allocation6 [shape = 'u8[8192]{0}', space=vmem, size = 0x2000, scoped, tag = 'input window, operand 0']
    #allocation7 [shape = 's32[2]{0}', space=sflag, size = 0x8, scoped, tag = 'scoped memory for tpu_custom_call.1']
    #allocation8 [shape = 's32[2]{0}', space=sflag, size = 0x8, scoped, tag = 'scoped memory for tpu_custom_call.1']
    #allocation9 [shape = 'u8[4096]{0}', space=vmem, size = 0x1000, scoped, tag = 'input window, operand 1']
    #allocation10 [shape = 's32[2]{0}', space=sflag, size = 0x8, scoped, tag = 'scoped memory for tpu_custom_call.1']
    #allocation11 [shape = 'u8[4096]{0}', space=vmem, size = 0x1000, scoped, tag = 'input window, operand 2']
    #allocation12 [shape = 'u8[4096]{0}', space=vmem, size = 0x1000, scoped, tag = 'output window, operand 0']
    %8 = vsyncpa [#allocation7], 0
    %s9 = scalar_lea.sflag [#allocation7], 1
    %10 = vsyncpa %s9, 0
    %11 = vsyncpa [#allocation10], 0
    %s12 = scalar_lea.sflag [#allocation10], 1
    %13 = vsyncpa %s12, 0
    %14 = vsyncpa [#allocation8], 0
    %s15 = scalar_lea.sflag [#allocation8], 1
    %16 = vsyncpa %s15, 0
    loop: start=0, step=1, limit=4
    $region2: #{tpu_custom_call.1} parent=1 // loop_pre_header
      _
    $region3: #{tpu_custom_call.1} parent=1 // loop_header
      %s18 = sphi 0, %s22
      %p19 = scmp.ge.s32.totalorder %s18, 4
      %s25 = sphi 0, %s37
      %s26 = sphi 0, %s33
      %s27 = sphi 0, %s25
      %s28 = sphi 0, %s26
      %s29 = sphi 0, %s27
      %s30 = sphi 0, %s28
      %s42 = sphi 0, %s44
      %s45 = sphi 0, %s42
      %s46 = sphi 0, %s45
      %s62 = sphi 0, %s46
      %s70 = sphi 0, %s72
      %s73 = sphi 0, %s70
      %s74 = sphi 0, %s73
      %s90 = sphi 0, %s74
      %s96 = sphi 0, %s98
      %s99 = sphi 0, %s96
      %s100 = sphi 0, %s99
      %s116 = sphi 0, %s100
      %s122 = sphi 0, %s124
      %s125 = sphi 0, %s122
      %s126 = sphi 0, %s125
      %s142 = sphi 0, %s126
    $region4: #{tpu_custom_call.1} parent=1 // loop_header_branch
      %21 = sbr.rel (%p19) target = $region8
    $region5: #{tpu_custom_call.1} parent=1 // loop_body
      %s23 = ssub.s32 %s18, 1
      %s24 = ssub.s32 %s18, 2
      %s31 = sadd.s32 1, %s26
      %p32 = scmp.ge.s32.totalorder %s31, 1
      %s33 = scalar_select %p32, 0, %s31
      %s34 = sadd.s32 1, %s25
      %s35 = scalar_select %p32, %s34, %s25
      %p36 = scmp.ge.s32.totalorder %s35, 2
      %s37 = scalar_select %p36, 0, %s35
      %s38 = ssub.s32 %s25, %s37
      %s39 = ssub.s32 %s26, %s33
      %s40 = sor.u32 %s38, %s39
      %p41 = scmp.eq.s32.totalorder %s40, 0
      %s43 = sadd.s32 %s42, 1
      %s44 = scalar_select %p41, %s42, %s43
      %p47 = pneg %p41
      %p48 = scmp.eq.s32.totalorder %s18, 1
      %p49 = por %p47, %p48
      %p50 = scmp.ne.s32.totalorder %s42, %s45
      %p51 = scmp.eq.s32.totalorder %s18, 0
      %p52 = por %p50, %p51
      %p53 = scmp.ne.s32.totalorder %s42, %s45
      %p54 = scmp.eq.s32.totalorder %s23, 1
      %p55 = por %p53, %p54
      %p56 = scmp.ne.s32.totalorder %s45, %s46
      %p57 = scmp.eq.s32.totalorder %s23, 0
      %p58 = por %p56, %p57
      %p59 = scmp.ne.s32.totalorder %s45, %s46
      %p60 = scmp.eq.s32.totalorder %s24, 1
      %p61 = por %p59, %p60
      %p63 = scmp.ne.s32.totalorder %s46, %s62
      %p64 = scmp.eq.s32.totalorder %s24, 0
      %p65 = por %p63, %p64
      %s66 = ssub.s32 %s25, %s37
      %s67 = ssub.s32 %s26, %s33
      %s68 = sor.u32 %s66, %s67
      %p69 = scmp.eq.s32.totalorder %s68, 0
      %s71 = sadd.s32 %s70, 1
      %s72 = scalar_select %p69, %s70, %s71
      %p75 = pneg %p69
      %p76 = scmp.eq.s32.totalorder %s18, 1
      %p77 = por %p75, %p76
      %p78 = scmp.ne.s32.totalorder %s70, %s73
      %p79 = scmp.eq.s32.totalorder %s18, 0
      %p80 = por %p78, %p79
      %p81 = scmp.ne.s32.totalorder %s70, %s73
      %p82 = scmp.eq.s32.totalorder %s23, 1
      %p83 = por %p81, %p82
      %p84 = scmp.ne.s32.totalorder %s73, %s74
      %p85 = scmp.eq.s32.totalorder %s23, 0
      %p86 = por %p84, %p85
      %p87 = scmp.ne.s32.totalorder %s73, %s74
      %p88 = scmp.eq.s32.totalorder %s24, 1
      %p89 = por %p87, %p88
      %p91 = scmp.ne.s32.totalorder %s74, %s90
      %p92 = scmp.eq.s32.totalorder %s24, 0
      %p93 = por %p91, %p92
      %s94 = ssub.s32 %s25, %s37
      %p95 = scmp.eq.s32.totalorder %s94, 0
      %s97 = sadd.s32 %s96, 1
      %s98 = scalar_select %p95, %s96, %s97
      %p101 = pneg %p95
      %p102 = scmp.eq.s32.totalorder %s18, 1
      %p103 = por %p101, %p102
      %p104 = scmp.ne.s32.totalorder %s96, %s99
      %p105 = scmp.eq.s32.totalorder %s18, 0
      %p106 = por %p104, %p105
      %p107 = scmp.ne.s32.totalorder %s96, %s99
      %p108 = scmp.eq.s32.totalorder %s23, 1
      %p109 = por %p107, %p108
      %p110 = scmp.ne.s32.totalorder %s99, %s100
      %p111 = scmp.eq.s32.totalorder %s23, 0
      %p112 = por %p110, %p111
      %p113 = scmp.ne.s32.totalorder %s99, %s100
      %p114 = scmp.eq.s32.totalorder %s24, 1
      %p115 = por %p113, %p114
      %p117 = scmp.ne.s32.totalorder %s100, %s116
      %p118 = scmp.eq.s32.totalorder %s24, 0
      %p119 = por %p117, %p118
      %s120 = ssub.s32 %s25, %s37
      %p121 = scmp.eq.s32.totalorder %s120, 0
      %s123 = sadd.s32 %s122, 1
      %s124 = scalar_select %p121, %s122, %s123
      %p127 = pneg %p121
      %p128 = scmp.eq.s32.totalorder %s18, 1
      %p129 = por %p127, %p128
      %p130 = scmp.ne.s32.totalorder %s122, %s125
      %p131 = scmp.eq.s32.totalorder %s18, 0
      %p132 = por %p130, %p131
      %p133 = scmp.ne.s32.totalorder %s122, %s125
      %p134 = scmp.eq.s32.totalorder %s23, 1
      %p135 = por %p133, %p134
      %p136 = scmp.ne.s32.totalorder %s125, %s126
      %p137 = scmp.eq.s32.totalorder %s23, 0
      %p138 = por %p136, %p137
      %p139 = scmp.ne.s32.totalorder %s125, %s126
      %p140 = scmp.eq.s32.totalorder %s24, 1
      %p141 = por %p139, %p140
      %p143 = scmp.ne.s32.totalorder %s126, %s142
      %p144 = scmp.eq.s32.totalorder %s24, 0
      %p145 = por %p143, %p144
      %p146 = scmp.le.s32.totalorder 1, %s18
      %p147 = scmp.lt.s32.totalorder %s18, 3
      %p148 = pnand %p146, %p147
      %p149 = pneg %p148
      // Predicated region
      $region9: #{tpu_custom_call.1} parent=5 // pred_check
        _
      $region10: #{tpu_custom_call.1} parent=5 // pred_check_branch
        %151 = sbr.rel (%p148) target = $region12
      $region11: #{tpu_custom_call.1} parent=5 // pred_region
        %s152 = ssub.s32 %s18, 1
      $region12: #{tpu_custom_call.1} parent=5 // pred_fallthru
        _
      %p153 = scmp.lt.s32.totalorder %s18, 2
      // Predicated region
      $region13: #{tpu_custom_call.1} parent=5 // pred_check
        %p154 = pneg %p153
      $region14: #{tpu_custom_call.1} parent=5 // pred_check_branch
        %156 = sbr.rel (%p154) target = $region16
      $region15: #{tpu_custom_call.1} parent=5 // pred_region
        // Predicated region
        $region17: #{tpu_custom_call.1} parent=15 // pred_check
          %p157 = pneg %p52
        $region18: #{tpu_custom_call.1} parent=15 // pred_check_branch
          %159 = sbr.rel (%p157) target = $region20
        $region19: #{tpu_custom_call.1} parent=15 // pred_region
          %s160 = sand.u32 %s42, 1
          %s161 = scalar_lea.sflag [#allocation7], %s160
          %s162 = sand.u32 %s42, 1
          %s163 = smul.addr %s162, 8
          %s164 = scalar_lea.vmem [#allocation6], %s163
          %s165 = smul.u32 2, %s26
          %s167 = ssub.s32 128, 128
          %168 = vsyncadd %s161, %s167
          %s169 = smul.addr %s25, 2
          %s170 = sadd.s32 %s165, %s169
          %s171 = smul.addr %s170, 64
          %s172 = scalar_lea.hbm %s0, %s171
          %s174 = sshll.u32 %s164, 4
          %s175 = int_to_ptr.vmem [resolvable:$true] %s174
          %177 = dma.hbm_to_vmem [thread:$0]  %s172, 128, %s175, %s161
        $region20: #{tpu_custom_call.1} parent=15 // pred_fallthru
          _
        // Predicated region
        $region21: #{tpu_custom_call.1} parent=15 // pred_check
          %p178 = pneg %p80
        $region22: #{tpu_custom_call.1} parent=15 // pred_check_branch
          %180 = sbr.rel (%p178) target = $region24
        $region23: #{tpu_custom_call.1} parent=15 // pred_region
          %s181 = sand.u32 %s18, 1
          %s182 = scalar_lea.sflag [#allocation10], %s181
          %s183 = sand.u32 %s70, 1
          %s184 = smul.addr %s183, 4
          %s185 = scalar_lea.vmem [#allocation9], %s184
          %s186 = smul.u32 2, %s26
          %s188 = ssub.s32 64, 64
          %189 = vsyncadd %s182, %s188
          %s190 = smul.addr %s25, 2
          %s191 = sadd.s32 %s186, %s190
          %s192 = smul.addr %s191, 32
          %s193 = scalar_lea.hbm %s1, %s192
          %s195 = sshll.u32 %s185, 4
          %s196 = int_to_ptr.vmem [resolvable:$true] %s195
          %198 = dma.hbm_to_vmem [thread:$0]  %s193, 64, %s196, %s182
        $region24: #{tpu_custom_call.1} parent=15 // pred_fallthru
          _
        // Predicated region
        $region25: #{tpu_custom_call.1} parent=15 // pred_check
          %p199 = pneg %p106
        $region26: #{tpu_custom_call.1} parent=15 // pred_check_branch
          %201 = sbr.rel (%p199) target = $region28
        $region27: #{tpu_custom_call.1} parent=15 // pred_region
          %s202 = sand.u32 %s18, 1
          %s203 = scalar_lea.sflag [#allocation10], %s202
          %s204 = sand.u32 %s96, 1
          %s205 = smul.addr %s204, 4
          %s206 = scalar_lea.vmem [#allocation11], %s205
          %s208 = ssub.s32 64, 64
          %209 = vsyncadd %s203, %s208
          %s210 = smul.addr %s25, 64
          %s211 = scalar_lea.hbm %s2, %s210
          %s213 = sshll.u32 %s206, 4
          %s214 = int_to_ptr.vmem [resolvable:$true] %s213
          %216 = dma.hbm_to_vmem [thread:$0]  %s211, 64, %s214, %s203
        $region28: #{tpu_custom_call.1} parent=15 // pred_fallthru
          _
      $region16: #{tpu_custom_call.1} parent=5 // pred_fallthru
        _
      %p217 = scmp.le.s32.totalorder 1, %s18
      %p218 = scmp.lt.s32.totalorder %s18, 3
      %p219 = pnand %p217, %p218
      %p220 = pneg %p219
      // Predicated region
      $region29: #{tpu_custom_call.1} parent=5 // pred_check
        _
      $region30: #{tpu_custom_call.1} parent=5 // pred_check_branch
        %222 = sbr.rel (%p219) target = $region32
      $region31: #{tpu_custom_call.1} parent=5 // pred_region
        %s223 = ssub.s32 %s18, 1
        %s224 = sand.u32 %s45, 1
        %s225 = scalar_lea.sflag [#allocation7], %s224
        %s226 = sand.u32 %s45, 1
        %s227 = smul.addr %s226, 8
        %s228 = scalar_lea.vmem [#allocation6], %s227
        // Predicated region
        $region33: #{tpu_custom_call.1} parent=31 // pred_check
          %p229 = pneg %p58
        $region34: #{tpu_custom_call.1} parent=31 // pred_check_branch
          %231 = sbr.rel (%p229) target = $region36
        $region35: #{tpu_custom_call.1} parent=31 // pred_region
          %232 = dma.done %s225, 128
        $region36: #{tpu_custom_call.1} parent=31 // pred_fallthru
          _
        %s233 = sand.u32 %s23, 1
        %s234 = scalar_lea.sflag [#allocation10], %s233
        %s235 = sand.u32 %s73, 1
        %s236 = smul.addr %s235, 4
        %s237 = scalar_lea.vmem [#allocation9], %s236
        // Predicated region
        $region37: #{tpu_custom_call.1} parent=31 // pred_check
          %p238 = pneg %p86
        $region38: #{tpu_custom_call.1} parent=31 // pred_check_branch
          %240 = sbr.rel (%p238) target = $region40
        $region39: #{tpu_custom_call.1} parent=31 // pred_region
          %241 = dma.done %s234, 64
        $region40: #{tpu_custom_call.1} parent=31 // pred_fallthru
          _
        %s242 = sand.u32 %s23, 1
        %s243 = scalar_lea.sflag [#allocation10], %s242
        %s244 = sand.u32 %s99, 1
        %s245 = smul.addr %s244, 4
        %s246 = scalar_lea.vmem [#allocation11], %s245
        // Predicated region
        $region41: #{tpu_custom_call.1} parent=31 // pred_check
          %p247 = pneg %p112
        $region42: #{tpu_custom_call.1} parent=31 // pred_check_branch
          %249 = sbr.rel (%p247) target = $region44
        $region43: #{tpu_custom_call.1} parent=31 // pred_region
          %250 = dma.done %s243, 64
        $region44: #{tpu_custom_call.1} parent=31 // pred_fallthru
          _
        %s251 = sand.u32 %s45, 1
        %s252 = scalar_lea.sflag [#allocation7], %s251
        %s253 = sand.u32 %s45, 1
        %s254 = smul.addr %s253, 8
        %s255 = scalar_lea.vmem [#allocation6], %s254
        %p256 = pneg %p58
        %p257 = pneg %p55
        %s258 = sand.u32 %s23, 1
        %s259 = scalar_lea.sflag [#allocation10], %s258
        %s260 = sand.u32 %s73, 1
        %s261 = smul.addr %s260, 4
        %s262 = scalar_lea.vmem [#allocation9], %s261
        %p263 = pneg %p86
        %p264 = pneg %p83
        %s265 = sand.u32 %s23, 1
        %s266 = scalar_lea.sflag [#allocation10], %s265
        %s267 = sand.u32 %s99, 1
        %s268 = smul.addr %s267, 4
        %s269 = scalar_lea.vmem [#allocation11], %s268
        %p270 = pneg %p112
        %p271 = pneg %p109
        %p272 = pneg %p138
        %p273 = pneg %p135
        %s274 = sand.u32 %s125, 1
        %s275 = scalar_lea.sflag [#allocation8], %s274
        %s276 = sand.u32 %s125, 1
        %s277 = smul.addr %s276, 4
        %s278 = scalar_lea.vmem [#allocation12], %s277
        %s279 = smul.u32 2, %s28
        %s280 = smul.u32 2, %s28
        %p281 = scmp.eq.s32.totalorder %s28, 0
        // Predicated region
        $region45: #{tpu_custom_call.1} parent=31 // pred_check
          %p282 = pneg %p281
        $region46: #{tpu_custom_call.1} parent=31 // pred_check_branch
          %284 = sbr.rel (%p282) target = $region48
        $region47: #{tpu_custom_call.1} parent=31 // pred_region
          %vm285 = vcmask 125952
          %286 = vst.msk [vmem:[#allocation2] sm:$0xf] %vm285, 0.0
          %vm287 = vcmask 57344
          %288 = vst.msk [vmem:[#allocation3] sm:$0x1] %vm287, 0.0
          %289 = vst.msk [vmem:[#allocation4] sm:$0x1] %vm287, 0.0
          %vm290 = vcmask 3072
          %291 = vst.msk [vmem:[#allocation5] sm:$0xf] %vm290, 0.0
        $region48: #{tpu_custom_call.1} parent=31 // pred_fallthru
          _
        %v292 = vld [vmem:[%s228] sm:$0xff]
        %v293 = vunpack.c.l.bf16 %v292
        %v294 = vunpack.c.h.bf16 %v292
        %v295 = vld [vmem:[%s237] sm:$0xf]
        %v296 = vunpack.c.l.bf16 %v295
        %v297 = vmax.f32 %v293, 1e-06
        %v298 = vmax.f32 %v294, 1e-06
        %v299 = vmin.f32 %v297, 0.999999
        %v300 = vmin.f32 %v298, 0.999999
        %v301 = vlog2.pop %v299
        %v302 = vmul.f32 %v301, 0.6931472
        %v303 = vlog2.pop %v300
        %v304 = vmul.f32 %v303, 0.6931472
        %v305 = vsub.f32 0.0, %v302
        %v306 = vsub.f32 0.0, %v304
        %v307 = vsub.f32 1.0, %v299
        %v308 = vsub.f32 1.0, %v300
        %v309 = vlog2.pop %v307
        %v310 = vmul.f32 %v309, 0.6931472
        %v311 = vlog2.pop %v308
        %v312 = vmul.f32 %v311, 0.6931472
        %v313 = vsub.f32 0.0, %v310
        %v314 = vsub.f32 0.0, %v312
        %v315 = vxor.u32 %v299, 2147483648
        %v316 = vxor.u32 %v300, 2147483648
        %v317 = vmul.f32 %v315, 1.442695
        %v318 = vpow.pop %v317
        %v319 = vmul.f32 %v316, 1.442695
        %v320 = vpow.pop %v319
        %v321 = vadd.f32 %v318, 1.0
        %v322 = vadd.f32 %v320, 1.0
        %v323 = vrcp.pop %v321
        %v324 = vmul.f32 1.0, %v323
        %v325 = vrcp.pop %v322
        %v326 = vmul.f32 1.0, %v325
        %v327 = vsub.f32 %v305, %v313
        %v328 = vsub.f32 %v306, %v314
        %v329 = vld [vmem:[#allocation2] sm:$0xf]
        %v331 = vcombine.high %v296, %v296
        %333 = vmatprep.subr.mxu0 %v328
        %334 = vmatpush1.xpose.msra.mxu0 %v327
        %335 = vmatprep.subr.mxu0 %v326
        %336 = vmatpush1.xpose.msra.mxu0 %v324
        %337 = vmatprep.subr.mxu0 0.0
        %338 = vmatpush1.xpose.msra.mxu0 0.0
        %339 = vmatprep.subr.mxu0 0.0
        %340 = vmatpush1.xpose.msra.mxu0 0.0
        %341 = vmatprep.subr.mxu0 0.0
        %342 = vmatpush1.xpose.msra.mxu0 0.0
        %343 = vmatprep.subr.mxu0 0.0
        %344 = vmatpush1.xpose.msra.mxu0 0.0
        %345 = vmatprep.subr.mxu0 0.0
        %346 = vmatpush1.xpose.msra.mxu0 0.0
        %347 = vmatprep.subr.mxu0 0.0
        %348 = vmatpush1.xpose.msra.mxu0 0.0
        %349 = vmatprep.subr.mxu0 0.0
        %350 = vmatpush1.xpose.msra.mxu0 0.0
        %351 = vmatprep.subr.mxu0 0.0
        %352 = vmatpush1.xpose.msra.mxu0 0.0
        %353 = vmatprep.subr.mxu0 0.0
        %354 = vmatpush1.xpose.msra.mxu0 0.0
        %355 = vmatprep.subr.mxu0 0.0
        %356 = vmatpush1.xpose.msra.mxu0 0.0
        %357 = vmatprep.subr.mxu0 0.0
        %358 = vmatpush1.xpose.msra.mxu0 0.0
        %359 = vmatprep.subr.mxu0 0.0
        %360 = vmatpush1.xpose.msra.mxu0 0.0
        %361 = vmatprep.subr.mxu0 0.0
        %362 = vmatpush1.xpose.msra.mxu0 0.0
        %363 = vmatprep.subr.mxu0 0.0
        %364 = vmatpush1.xpose.msra.mxu0 0.0
        %365 = vmatprep.subr.mxu0 0.0
        %366 = vmatpush1.xpose.msra.mxu0 0.0
        %367 = vmatprep.subr.mxu0 0.0
        %368 = vmatpush1.xpose.msra.mxu0 0.0
        %369 = vmatprep.subr.mxu0 0.0
        %370 = vmatpush1.xpose.msra.mxu0 0.0
        %371 = vmatprep.subr.mxu0 0.0
        %372 = vmatpush1.xpose.msra.mxu0 0.0
        %373 = vmatprep.subr.mxu0 0.0
        %374 = vmatpush1.xpose.msra.mxu0 0.0
        %375 = vmatprep.subr.mxu0 0.0
        %376 = vmatpush1.xpose.msra.mxu0 0.0
        %377 = vmatprep.subr.mxu0 0.0
        %378 = vmatpush1.xpose.msra.mxu0 0.0
        %379 = vmatprep.subr.mxu0 0.0
        %380 = vmatpush1.xpose.msra.mxu0 0.0
        %381 = vmatprep.subr.mxu0 0.0
        %382 = vmatpush1.xpose.msra.mxu0 0.0
        %383 = vmatprep.subr.mxu0 0.0
        %384 = vmatpush1.xpose.msra.mxu0 0.0
        %385 = vmatprep.subr.mxu0 0.0
        %386 = vmatpush1.xpose.msra.mxu0 0.0
        %387 = vmatprep.subr.mxu0 0.0
        %388 = vmatpush1.xpose.msra.mxu0 0.0
        %389 = vmatprep.subr.mxu0 0.0
        %390 = vmatpush1.xpose.msra.mxu0 0.0
        %391 = vmatprep.subr.mxu0 0.0
        %392 = vmatpush1.xpose.msra.mxu0 0.0
        %393 = vmatprep.subr.mxu0 0.0
        %394 = vmatpush1.xpose.msra.mxu0 0.0
        %395 = vmatprep.subr.mxu0 0.0
        %396 = vmatpush1.xpose.msra.mxu0 0.0
        %397 = vmatprep.mubr.f32.mxu0 %v331
        %398 = vmatmul.mubr.f32.gmra.mrb[0].mxu0 %v296
        %v399 = vpop.f32.mrb[0].mxu0
        %v400 = vadd.f32 0.0, %v399
        %v401 = vpop.f32.mrb[0].mxu0
        %402 = vdwg.mxu0
        %v403 = vadd.f32 %v329, %v400
        %vm404 = vcmask 125952
        %405 = vst.msk [vmem:[#allocation2] sm:$0xf] %vm404, %v403
        %v406 = vld [vmem:[#allocation3] sm:$0x1]
        %v407 = vadd.f32 %v313, %v314
        %408 = vadd.xlane.f32.xlu0 %v407
        %v409 = vpop.xlane.xlu0 %408
        %v411 = vlaneseq
        %v412 = vshrl.u32 %v411, 7
        %v413 = vsub.s32 0, %v412
        %v414 = vrot.slane %v409, %v413
        %v415 = vlaneseq
        %v416 = vshrl.u32 %v415, 7
        %v417 = vsub.s32 1, %v416
        %v418 = vrot.slane %v409, %v417
        %v419 = vlaneseq
        %v420 = vshrl.u32 %v419, 7
        %v421 = vsub.s32 2, %v420
        %v422 = vrot.slane %v409, %v421
        %v423 = vlaneseq
        %v424 = vshrl.u32 %v423, 7
        %v425 = vsub.s32 3, %v424
        %v426 = vrot.slane %v409, %v425
        %v427 = vlaneseq
        %v428 = vshrl.u32 %v427, 7
        %v429 = vsub.s32 4, %v428
        %v430 = vrot.slane %v409, %v429
        %v431 = vlaneseq
        %v432 = vshrl.u32 %v431, 7
        %v433 = vsub.s32 5, %v432
        %v434 = vrot.slane %v409, %v433
        %v435 = vlaneseq
        %v436 = vshrl.u32 %v435, 7
        %v437 = vsub.s32 6, %v436
        %v438 = vrot.slane %v409, %v437
        %v439 = vlaneseq
        %v440 = vshrl.u32 %v439, 7
        %v441 = vsub.s32 7, %v440
        %v442 = vrot.slane %v409, %v441
        %v443 = vcombine.low %v414, %v418
        %v444 = vcombine.low %v422, %v426
        %v445 = vcombine.low %v430, %v434
        %v446 = vcombine.low %v438, %v442
        %v448 = vunpack.c.l.s4 1966171168
        %v449 = vunpack.c.0.s8 %v448
        %v450 = vlaneseq
        %v451 = vshrl.u32 %v450, 7
        %v452 = vsub.s32 %v449, %v451
        %v453 = vrot.slane %v443, %v452
        %v455 = vunpack.c.l.s4 1966171168
        %v456 = vunpack.c.0.s8 %v455
        %v457 = vlaneseq
        %v458 = vshrl.u32 %v457, 7
        %v459 = vsub.s32 %v456, %v458
        %v460 = vrot.slane %v444, %v459
        %v462 = vunpack.c.l.s4 1966171168
        %v463 = vunpack.c.0.s8 %v462
        %v464 = vlaneseq
        %v465 = vshrl.u32 %v464, 7
        %v466 = vsub.s32 %v463, %v465
        %v467 = vrot.slane %v445, %v466
        %v469 = vunpack.c.l.s4 1966171168
        %v470 = vunpack.c.0.s8 %v469
        %v471 = vlaneseq
        %v472 = vshrl.u32 %v471, 7
        %v473 = vsub.s32 %v470, %v472
        %v474 = vrot.slane %v446, %v473
        %v475 = vcombine.low %v453, %v460
        %v476 = vcombine.low %v467, %v474
        %v478 = vunpack.c.l.s4 1966171168
        %v479 = vunpack.c.0.s8 %v478
        %v480 = vlaneseq
        %v481 = vshrl.u32 %v480, 7
        %v482 = vsub.s32 %v479, %v481
        %v483 = vrot.slane %v475, %v482
        %v485 = vunpack.c.l.s4 1966171168
        %v486 = vunpack.c.0.s8 %v485
        %v487 = vlaneseq
        %v488 = vshrl.u32 %v487, 7
        %v489 = vsub.s32 %v486, %v488
        %v490 = vrot.slane %v476, %v489
        %v491 = vcombine.low %v483, %v490
        %492 = vset.pattern.permute.xlu0 0
        %493 = vperm.xlu0 %492, %v491
        %v494 = vpop.permute.xlu0 %493
        %v495 = vlaneseq
        %v496 = vand.u32 %v495, 127
        %v497 = vlaneseq
        %v498 = vshrl.u32 %v497, 7
        %v499 = vsub.s32 %v496, %v498
        %v500 = vrot.slane %v494, %v499
        %v502 = vunpack.c.l.s4 1966171168
        %v503 = vunpack.c.0.s8 %v502
        %v504 = vlaneseq
        %v505 = vshrl.u32 %v504, 7
        %v506 = vsub.s32 %v503, %v505
        %v507 = vrot.slane %v500, %v506
        %v509 = vunpack.c.l.s4 1966171168
        %v510 = vunpack.c.0.s8 %v509
        %v511 = vlaneseq
        %v512 = vshrl.u32 %v511, 7
        %v513 = vsub.s32 %v510, %v512
        %v514 = vrot.slane %v507, %v513
        %v516 = vadd.f32 %v406, %v514
        %vm517 = vcmask 57344
        %518 = vst.msk [vmem:[#allocation3] sm:$0x1] %vm517, %v516
        %v519 = vld [vmem:[#allocation4] sm:$0x1]
        %v520 = vadd.f32 %v324, %v326
        %521 = vadd.xlane.f32.xlu0 %v520
        %v522 = vpop.xlane.xlu0 %521
        %v524 = vlaneseq
        %v525 = vshrl.u32 %v524, 7
        %v526 = vsub.s32 0, %v525
        %v527 = vrot.slane %v522, %v526
        %v528 = vlaneseq
        %v529 = vshrl.u32 %v528, 7
        %v530 = vsub.s32 1, %v529
        %v531 = vrot.slane %v522, %v530
        %v532 = vlaneseq
        %v533 = vshrl.u32 %v532, 7
        %v534 = vsub.s32 2, %v533
        %v535 = vrot.slane %v522, %v534
        %v536 = vlaneseq
        %v537 = vshrl.u32 %v536, 7
        %v538 = vsub.s32 3, %v537
        %v539 = vrot.slane %v522, %v538
        %v540 = vlaneseq
        %v541 = vshrl.u32 %v540, 7
        %v542 = vsub.s32 4, %v541
        %v543 = vrot.slane %v522, %v542
        %v544 = vlaneseq
        %v545 = vshrl.u32 %v544, 7
        %v546 = vsub.s32 5, %v545
        %v547 = vrot.slane %v522, %v546
        %v548 = vlaneseq
        %v549 = vshrl.u32 %v548, 7
        %v550 = vsub.s32 6, %v549
        %v551 = vrot.slane %v522, %v550
        %v552 = vlaneseq
        %v553 = vshrl.u32 %v552, 7
        %v554 = vsub.s32 7, %v553
        %v555 = vrot.slane %v522, %v554
        %v556 = vcombine.low %v527, %v531
        %v557 = vcombine.low %v535, %v539
        %v558 = vcombine.low %v543, %v547
        %v559 = vcombine.low %v551, %v555
        %v561 = vunpack.c.l.s4 1966171168
        %v562 = vunpack.c.0.s8 %v561
        %v563 = vlaneseq
        %v564 = vshrl.u32 %v563, 7
        %v565 = vsub.s32 %v562, %v564
        %v566 = vrot.slane %v556, %v565
        %v568 = vunpack.c.l.s4 1966171168
        %v569 = vunpack.c.0.s8 %v568
        %v570 = vlaneseq
        %v571 = vshrl.u32 %v570, 7
        %v572 = vsub.s32 %v569, %v571
        %v573 = vrot.slane %v557, %v572
        %v575 = vunpack.c.l.s4 1966171168
        %v576 = vunpack.c.0.s8 %v575
        %v577 = vlaneseq
        %v578 = vshrl.u32 %v577, 7
        %v579 = vsub.s32 %v576, %v578
        %v580 = vrot.slane %v558, %v579
        %v582 = vunpack.c.l.s4 1966171168
        %v583 = vunpack.c.0.s8 %v582
        %v584 = vlaneseq
        %v585 = vshrl.u32 %v584, 7
        %v586 = vsub.s32 %v583, %v585
        %v587 = vrot.slane %v559, %v586
        %v588 = vcombine.low %v566, %v573
        %v589 = vcombine.low %v580, %v587
        %v591 = vunpack.c.l.s4 1966171168
        %v592 = vunpack.c.0.s8 %v591
        %v593 = vlaneseq
        %v594 = vshrl.u32 %v593, 7
        %v595 = vsub.s32 %v592, %v594
        %v596 = vrot.slane %v588, %v595
        %v598 = vunpack.c.l.s4 1966171168
        %v599 = vunpack.c.0.s8 %v598
        %v600 = vlaneseq
        %v601 = vshrl.u32 %v600, 7
        %v602 = vsub.s32 %v599, %v601
        %v603 = vrot.slane %v589, %v602
        %v604 = vcombine.low %v596, %v603
        %605 = vset.pattern.permute.xlu0 0
        %606 = vperm.xlu0 %605, %v604
        %v607 = vpop.permute.xlu0 %606
        %v608 = vlaneseq
        %v609 = vshrl.u32 %v608, 7
        %v610 = vsub.s32 %v496, %v609
        %v611 = vrot.slane %v607, %v610
        %v613 = vunpack.c.l.s4 1966171168
        %v614 = vunpack.c.0.s8 %v613
        %v615 = vlaneseq
        %v616 = vshrl.u32 %v615, 7
        %v617 = vsub.s32 %v614, %v616
        %v618 = vrot.slane %v611, %v617
        %v620 = vunpack.c.l.s4 1966171168
        %v621 = vunpack.c.0.s8 %v620
        %v622 = vlaneseq
        %v623 = vshrl.u32 %v622, 7
        %v624 = vsub.s32 %v621, %v623
        %v625 = vrot.slane %v618, %v624
        %v627 = vadd.f32 %v519, %v625
        %628 = vst.msk [vmem:[#allocation4] sm:$0x1] %vm517, %v627
        %v629 = vld [vmem:[#allocation5] sm:$0xf]
        %vm630 = vcmask 1043456
        %v631 = vsel %vm630, %v296, 0.0
        %v632 = vsel %vm630, %v331, 0.0
        %v633 = vadd.f32 %v631, %v632
        %634 = vadd.xlane.f32.xlu0 %v633
        %v635 = vpop.xlane.xlu0 %634
        %v636 = vadd.f32 %v629, %v635
        %vm637 = vcmask 3072
        %638 = vst.msk [vmem:[#allocation5] sm:$0xf] %vm637, %v636
        // Predicated region
        $region49: #{tpu_custom_call.1} parent=31 // pred_check
          %p639 = pneg %p281
        $region50: #{tpu_custom_call.1} parent=31 // pred_check_branch
          %641 = sbr.rel (%p639) target = $region52
        $region51: #{tpu_custom_call.1} parent=31 // pred_region
          %v642 = vld [vmem:[#allocation2] sm:$0xf]
          %v643 = vld [vmem:[#allocation3] sm:$0x1]
          %v645 = vlaneseq
          %v646 = vshrl.u32 %v645, 7
          %v647 = vsub.s32 0, %v646
          %v648 = vrot.slane %v643, %v647
          %v650 = vadd.f32 %v642, %v648
          %v651 = vrcp.pop 256.0
          %v652 = vmul.f32 %v650, %v651
          %v653 = vmul.f32 %v642, 2.0
          %v654 = vadd.f32 %v653, 1.0
          %v655 = vld [vmem:[#allocation4] sm:$0x1]
          %v656 = vld [vmem:[#allocation5] sm:$0xf]
          %v658 = vlaneseq
          %v659 = vshrl.u32 %v658, 7
          %v660 = vsub.s32 0, %v659
          %v661 = vrot.slane %v655, %v660
          %664 = vset.pattern.permute.xlu0 0
          %665 = vperm.xlu0 %664, %v656
          %v666 = vpop.permute.xlu0 %665
          %v668 = vadd.f32 %v661, %v666
          %v669 = vadd.f32 %v668, 1.0
          %671 = vrot.lane.b32.xlu0 %v669, 8
          %v672 = vpop.permute.xlu0 %671
          %v674 = vrcp.pop %v672
          %v675 = vmul.f32 %v654, %v674
          %v676 = vsub.f32 1.0, %v675
          %v677 = vld [vmem:[%s246] sm:$0xf]
          %679 = vrot.lane.b32.xlu0 %v676, 120
          %v680 = vpop.permute.xlu0 %679
          %v682 = vadd.f32 %v652, %v680
          %v683 = vsub.f32 1.0, %v677
          %v684 = vadd.f32 %v682, %v683
          %vm685 = vcmask 60416
          %686 = vst.msk [vmem:[%s278] sm:$0xf] %vm685, %v684
        $region52: #{tpu_custom_call.1} parent=31 // pred_fallthru
          _
        %s687 = sand.u32 %s125, 1
        %s688 = scalar_lea.sflag [#allocation8], %s687
        %s689 = sand.u32 %s125, 1
        %s690 = smul.addr %s689, 4
        %s691 = scalar_lea.vmem [#allocation12], %s690
        // Predicated region
        $region53: #{tpu_custom_call.1} parent=31 // pred_check
          %p692 = pneg %p135
        $region54: #{tpu_custom_call.1} parent=31 // pred_check_branch
          %694 = sbr.rel (%p692) target = $region56
        $region55: #{tpu_custom_call.1} parent=31 // pred_region
          %s696 = ssub.s32 64, 64
          %697 = vsyncadd %s688, %s696
          %s698 = smul.addr %s27, 64
          %s699 = scalar_lea.hbm %s3, %s698
          %s701 = sshll.u32 %s691, 4
          %s702 = int_to_ptr.vmem [resolvable:$true] %s701
          %704 = dma.vmem_to_hbm [thread:$0]  %s702, 64, %s699, %s688
        $region56: #{tpu_custom_call.1} parent=31 // pred_fallthru
          _
      $region32: #{tpu_custom_call.1} parent=5 // pred_fallthru
        _
      %p705 = scmp.le.s32.totalorder 2, %s18
      // Predicated region
      $region57: #{tpu_custom_call.1} parent=5 // pred_check
        %p706 = pneg %p705
      $region58: #{tpu_custom_call.1} parent=5 // pred_check_branch
        %708 = sbr.rel (%p706) target = $region60
      $region59: #{tpu_custom_call.1} parent=5 // pred_region
        %s709 = ssub.s32 %s18, 2
        // Predicated region
        $region61: #{tpu_custom_call.1} parent=59 // pred_check
          %p710 = pneg %p141
        $region62: #{tpu_custom_call.1} parent=59 // pred_check_branch
          %712 = sbr.rel (%p710) target = $region64
        $region63: #{tpu_custom_call.1} parent=59 // pred_region
          %s713 = sand.u32 %s126, 1
          %s714 = scalar_lea.sflag [#allocation8], %s713
          %s715 = sand.u32 %s126, 1
          %s716 = smul.addr %s715, 4
          %s717 = scalar_lea.vmem [#allocation12], %s716
          %718 = dma.done %s714, 64
        $region64: #{tpu_custom_call.1} parent=59 // pred_fallthru
          _
      $region60: #{tpu_custom_call.1} parent=5 // pred_fallthru
        _
    $region6: #{tpu_custom_call.1} parent=1 // loop_footer
      %s22 = sadd.s32 1, %s18
    $region7: #{tpu_custom_call.1} parent=1 // loop_footer_branch
      %17 = sbr.rel target = $region3
    $region8: #{tpu_custom_call.1} parent=1 // loop_exit
      _
    %719 = vsyncpa [#allocation7], 1
    %s720 = scalar_lea.sflag [#allocation7], 1
    %721 = vsyncpa %s720, 1
    %722 = vsyncpa [#allocation10], 1
    %s723 = scalar_lea.sflag [#allocation10], 1
    %724 = vsyncpa %s723, 1
    %725 = vsyncpa [#allocation8], 1
    %s726 = scalar_lea.sflag [#allocation8], 1
    %727 = vsyncpa %s726, 1

</llo_original>
